<compile_context>
chip_gen: v7x
topology: tpu7x:2x2x1
jax: 0.10.0
libtpu: 0.0.40
codegen_flags: <defaults>
</compile_context>

<pallas_src>
import jax
import jax.numpy as jnp
from jax.experimental import pallas as pl
from jax.experimental.pallas import tpu as pltpu


def mlp_kernel(x_ref, w1_ref, b1_ref, w2_ref, b2_ref, w3_ref, b3_ref, o_ref):
    # Matmuls hit the MXU in bf16 with f32 accumulation; bias add / ReLU run on
    # the VPU in f32 (v5e has no bf16 VPU path).  Post-ReLU activations are kept
    # in bf16 so the f32 intermediates die right after the ReLU.
    cdt = w1_ref.dtype  # MXU operand dtype (bfloat16)

    x = x_ref[...].astype(cdt)

    h1 = jnp.dot(x, w1_ref[...], preferred_element_type=jnp.float32) + b1_ref[...]
    h1 = jnp.maximum(h1, 0.0).astype(cdt)

    h2 = jnp.dot(h1, w2_ref[...], preferred_element_type=jnp.float32) + b2_ref[...]
    h2 = jnp.maximum(h2, 0.0).astype(cdt)

    h3 = jnp.dot(h2, w3_ref[...], preferred_element_type=jnp.float32) + b3_ref[...]
    o_ref[...] = h3.astype(o_ref.dtype)


def _pick_block_b(B, max_block=2048):
    """Batch tile size.

    Large tiles (up to 2K rows) amortize the ~0.35us per-grid-step pipeline
    overhead; for B > 512 the batch is split into an even number of tiles so
    v7x's two TensorCores both get work under dimension_semantics=('parallel',).
    Tiles are multiples of 8 sublanes; for B <= 512 a single full-batch tile is
    used (block_shape == full dim is always legal).
    """
    if B <= 512:
        return B
    if B <= max_block:
        n_tiles = 2
    else:
        n_tiles = -(-B // max_block)          # ceil(B / max_block)
        if n_tiles % 2:
            n_tiles += 1                      # even grid for v7x's 2 TCs
    blk = -(-B // n_tiles)                    # ceil(B / n_tiles)
    return ((blk + 7) // 8) * 8               # round up to sublane multiple


def mlp_forward(x, params, *, block_b=None, out_dtype=jnp.float32):
    """Run the 3-layer MLP on x of shape (B, input_dim).

    x stays in its input dtype (f32) at the HBM boundary; the bf16 cast for the
    MXU happens inside the kernel.  Pass out_dtype=jnp.bfloat16 to halve the
    output writeback traffic when the consumer tolerates it.
    """
    w1, b1, w2, b2, w3, b3 = params
    B, d_in = x.shape
    d_hidden = w1.shape[1]
    d_out = w3.shape[1]

    if block_b is None:
        block_b = _pick_block_b(B)

    grid = (pl.cdiv(B, block_b),)
    # If B % block_b != 0 the last tile reads padded (garbage) rows; batch rows
    # never mix across the matmuls and the padded output rows are masked at
    # store, so valid rows are unaffected (exercised in __main__ with B=530).

    # Weights / biases are replicated across the batch grid (constant block
    # index -> fetched once, reused for every batch tile; ~0.25 MiB total).
    def rep2(shape):
        return pl.BlockSpec(shape, lambda i: (0, 0))

    flops = 2 * B * (d_in * d_hidden + d_hidden * d_hidden + d_hidden * d_out)
    bytes_accessed = (
        B * d_in * x.dtype.itemsize                                   # x (f32)
        + sum(int(p.size) * p.dtype.itemsize for p in params)         # weights
        + B * d_out * jnp.dtype(out_dtype).itemsize                   # output
    )

    return pl.pallas_call(
        mlp_kernel,
        out_shape=jax.ShapeDtypeStruct((B, d_out), out_dtype),
        grid=grid,
        in_specs=[
            pl.BlockSpec((block_b, d_in), lambda i: (i, 0)),   # x tile
            rep2(w1.shape),
            rep2(b1.shape),
            rep2(w2.shape),
            rep2(b2.shape),
            rep2(w3.shape),
            rep2(b3.shape),
        ],
        out_specs=pl.BlockSpec((block_b, d_out), lambda i: (i, 0)),
        compiler_params=pltpu.CompilerParams(
            dimension_semantics=("parallel",),
            # v5e's scoped-VMEM default is only 16 MiB; 32 MiB covers
            # block_b=2048 tiles (x + out double-buffered + intermediates
            # ~10 MiB) on every generation.
            vmem_limit_bytes=32 * 1024 * 1024,
        ),
        cost_estimate=pl.CostEstimate(
            flops=flops, transcendentals=0, bytes_accessed=bytes_accessed),
    )(x, w1, b1, w2, b2, w3, b3)


def init_params(key, input_dim=64, hidden_dim=256, output_dim=128,
                weight_dtype=jnp.bfloat16, bias_dtype=jnp.float32):
    """Deterministic synthetic parameters (PyTorch nn.Linear shapes, stored
    transposed as (in, out)).  Weights in bf16 for MXU peak / half the weight
    DMA traffic; biases in f32 (added to the f32 accumulator)."""
    ks = jax.random.split(key, 6)

    def linear(kw, kb, fan_in, fan_out):
        # Mimic torch's default U(-1/sqrt(fan_in), 1/sqrt(fan_in)) init.
        bound = 1.0 / jnp.sqrt(fan_in)
        w = jax.random.uniform(kw, (fan_in, fan_out), jnp.float32,
                               -bound, bound).astype(weight_dtype)
        b = jax.random.uniform(kb, (1, fan_out), jnp.float32,
                               -bound, bound).astype(bias_dtype)
        return w, b

    w1, b1 = linear(ks[0], ks[1], input_dim, hidden_dim)
    w2, b2 = linear(ks[2], ks[3], hidden_dim, hidden_dim)
    w3, b3 = linear(ks[4], ks[5], hidden_dim, output_dim)
    return (w1, b1, w2, b2, w3, b3)


def mlp_reference(x, params, out_dtype=jnp.float32):
    """Pure-JAX reference with the same numerics (bf16 operands, f32
    accumulation, f32 bias/ReLU), matching F.relu(fc(...)) semantics."""
    w1, b1, w2, b2, w3, b3 = params
    cdt = w1.dtype
    h = jnp.dot(x.astype(cdt), w1, preferred_element_type=jnp.float32) + b1
    h = jax.nn.relu(h).astype(cdt)
    h = jnp.dot(h, w2, preferred_element_type=jnp.float32) + b2
    h = jax.nn.relu(h).astype(cdt)
    y = jnp.dot(h, w3, preferred_element_type=jnp.float32) + b3
    return y.astype(out_dtype)


if __name__ == "__main__":
    key = jax.random.PRNGKey(0)
    k_x, k_x2, k_p = jax.random.split(key, 3)

    input_dim, hidden_dim, output_dim = 64, 256, 128
    params = init_params(k_p, input_dim, hidden_dim, output_dim)

    # Tiny single-tile case (module defaults, small batch).
    B_small = 8
    x_small = jax.random.normal(k_x, (B_small, input_dim), dtype=jnp.float32)
    out_small = jax.block_until_ready(mlp_forward(x_small, params))
    ref_small = mlp_reference(x_small, params)
    assert out_small.shape == (B_small, output_dim)
    assert jnp.allclose(out_small, ref_small, atol=1e-3, rtol=1e-3)

    # Multi-tile, ragged batch: B=530 -> even 2-tile grid (block_b=272), last
    # tile is partial.  Exercises pipelined batch tiling, v7x megacore split,
    # and out-of-bounds row masking on the final tile.
    B_big = 530
    x_big = jax.random.normal(k_x2, (B_big, input_dim), dtype=jnp.float32)
    out_big = jax.block_until_ready(mlp_forward(x_big, params))
    ref_big = mlp_reference(x_big, params)
    assert out_big.shape == (B_big, output_dim)
    assert jnp.allclose(out_big, ref_big, atol=1e-3, rtol=1e-3)

    print("KERNEL_OK")
</pallas_src>

<mosaic_0001>
module attributes {stable_mosaic.version = 11 : i64} {
  func.func @mlp_kernel(%arg0: i32, %arg1: memref<8x64xf32, #tpu.memory_space<vmem>>, %arg2: memref<64x256xbf16, #tpu.memory_space<vmem>>, %arg3: memref<1x256xf32, #tpu.memory_space<vmem>>, %arg4: memref<256x256xbf16, #tpu.memory_space<vmem>>, %arg5: memref<1x256xf32, #tpu.memory_space<vmem>>, %arg6: memref<256x128xbf16, #tpu.memory_space<vmem>>, %arg7: memref<1x128xf32, #tpu.memory_space<vmem>>, %arg8: memref<8x128xf32, #tpu.memory_space<vmem>>) attributes {dimension_semantics = [#tpu.dimension_semantics<parallel>], iteration_bounds = array<i64: 1>, scalar_prefetch = 0 : i64, scratch_operands = 0 : i64, tpu.core_type = #tpu.core_type<tc>, window_params = [{transform_indices = @transform_0, window_bounds = array<i64: 8, 64>}, {pipeline_mode = #tpu.pipeline_mode<synchronous>, transform_indices = @transform_1, window_bounds = array<i64: 64, 256>}, {pipeline_mode = #tpu.pipeline_mode<synchronous>, transform_indices = @transform_2, window_bounds = array<i64: 1, 256>}, {pipeline_mode = #tpu.pipeline_mode<synchronous>, transform_indices = @transform_3, window_bounds = array<i64: 256, 256>}, {pipeline_mode = #tpu.pipeline_mode<synchronous>, transform_indices = @transform_4, window_bounds = array<i64: 1, 256>}, {pipeline_mode = #tpu.pipeline_mode<synchronous>, transform_indices = @transform_5, window_bounds = array<i64: 256, 128>}, {pipeline_mode = #tpu.pipeline_mode<synchronous>, transform_indices = @transform_6, window_bounds = array<i64: 1, 128>}, {transform_indices = @transform_7, window_bounds = array<i64: 8, 128>}]} {
    %c0 = arith.constant 0 : index
    %c0_0 = arith.constant 0 : index
    %0 = vector.load %arg1[%c0, %c0_0] : memref<8x64xf32, #tpu.memory_space<vmem>>, vector<8x64xf32>
    %1 = arith.truncf %0 : vector<8x64xf32> to vector<8x64xbf16>
    %c0_1 = arith.constant 0 : index
    %c0_2 = arith.constant 0 : index
    %2 = vector.load %arg2[%c0_1, %c0_2] : memref<64x256xbf16, #tpu.memory_space<vmem>>, vector<64x256xbf16>
    %cst = arith.constant dense<0.000000e+00> : vector<8x256xf32>
    %3 = tpu.matmul %1, %2, %cst {dimension_numbers = #tpu.dot_dimension_numbers<[1], [0], [0], [1], [0, 0, 1, 1], [], []>} : vector<8x64xbf16>, vector<64x256xbf16>, vector<8x256xf32> -> vector<8x256xf32>
    %c0_3 = arith.constant 0 : index
    %c0_4 = arith.constant 0 : index
    %4 = vector.load %arg3[%c0_3, %c0_4] : memref<1x256xf32, #tpu.memory_space<vmem>>, vector<1x256xf32>
    %5 = vector.broadcast %4 : vector<1x256xf32> to vector<8x256xf32>
    %6 = arith.addf %3, %5 : vector<8x256xf32>
    %cst_5 = arith.constant 0.000000e+00 : f32
    %7 = vector.broadcast %cst_5 : f32 to vector<8x256xf32>
    %8 = arith.maximumf %6, %7 : vector<8x256xf32>
    %9 = arith.truncf %8 : vector<8x256xf32> to vector<8x256xbf16>
    %c0_6 = arith.constant 0 : index
    %c0_7 = arith.constant 0 : index
    %10 = vector.load %arg4[%c0_6, %c0_7] : memref<256x256xbf16, #tpu.memory_space<vmem>>, vector<256x256xbf16>
    %cst_8 = arith.constant dense<0.000000e+00> : vector<8x256xf32>
    %11 = tpu.matmul %9, %10, %cst_8 {dimension_numbers = #tpu.dot_dimension_numbers<[1], [0], [0], [1], [0, 0, 1, 1], [], []>} : vector<8x256xbf16>, vector<256x256xbf16>, vector<8x256xf32> -> vector<8x256xf32>
    %c0_9 = arith.constant 0 : index
    %c0_10 = arith.constant 0 : index
    %12 = vector.load %arg5[%c0_9, %c0_10] : memref<1x256xf32, #tpu.memory_space<vmem>>, vector<1x256xf32>
    %13 = vector.broadcast %12 : vector<1x256xf32> to vector<8x256xf32>
    %14 = arith.addf %11, %13 : vector<8x256xf32>
    %cst_11 = arith.constant 0.000000e+00 : f32
    %15 = vector.broadcast %cst_11 : f32 to vector<8x256xf32>
    %16 = arith.maximumf %14, %15 : vector<8x256xf32>
    %17 = arith.truncf %16 : vector<8x256xf32> to vector<8x256xbf16>
    %c0_12 = arith.constant 0 : index
    %c0_13 = arith.constant 0 : index
    %18 = vector.load %arg6[%c0_12, %c0_13] : memref<256x128xbf16, #tpu.memory_space<vmem>>, vector<256x128xbf16>
    %cst_14 = arith.constant dense<0.000000e+00> : vector<8x128xf32>
    %19 = tpu.matmul %17, %18, %cst_14 {dimension_numbers = #tpu.dot_dimension_numbers<[1], [0], [0], [1], [0, 0, 1, 1], [], []>} : vector<8x256xbf16>, vector<256x128xbf16>, vector<8x128xf32> -> vector<8x128xf32>
    %c0_15 = arith.constant 0 : index
    %c0_16 = arith.constant 0 : index
    %20 = vector.load %arg7[%c0_15, %c0_16] : memref<1x128xf32, #tpu.memory_space<vmem>>, vector<1x128xf32>
    %21 = vector.broadcast %20 : vector<1x128xf32> to vector<8x128xf32>
    %22 = arith.addf %19, %21 : vector<8x128xf32>
    %c0_17 = arith.constant 0 : index
    %c0_18 = arith.constant 0 : index
    %23 = vector.load %arg8[%c0_17, %c0_18] : memref<8x128xf32, #tpu.memory_space<vmem>>, vector<8x128xf32>
    tpu.vector_store %arg8[%c0_17, %c0_18], %22 {strides = array<i32>} : memref<8x128xf32, #tpu.memory_space<vmem>>, vector<8x128xf32>,
    return
  }
  func.func @transform_0(%arg0: i32) -> (i32, i32) {
    %c0_i32 = arith.constant 0 : i32
    %c0_i32_0 = arith.constant 0 : i32
    return %arg0, %c0_i32 : i32, i32
  }
  func.func @transform_1(%arg0: i32) -> (i32, i32) {
    %c0_i32 = arith.constant 0 : i32
    %c0_i32_0 = arith.constant 0 : i32
    %c0_i32_1 = arith.constant 0 : i32
    return %c0_i32, %c0_i32_0 : i32, i32
  }
  func.func @transform_2(%arg0: i32) -> (i32, i32) {
    %c0_i32 = arith.constant 0 : i32
    %c0_i32_0 = arith.constant 0 : i32
    %c0_i32_1 = arith.constant 0 : i32
    return %c0_i32, %c0_i32_0 : i32, i32
  }
  func.func @transform_3(%arg0: i32) -> (i32, i32) {
    %c0_i32 = arith.constant 0 : i32
    %c0_i32_0 = arith.constant 0 : i32
    %c0_i32_1 = arith.constant 0 : i32
    return %c0_i32, %c0_i32_0 : i32, i32
  }
  func.func @transform_4(%arg0: i32) -> (i32, i32) {
    %c0_i32 = arith.constant 0 : i32
    %c0_i32_0 = arith.constant 0 : i32
    %c0_i32_1 = arith.constant 0 : i32
    return %c0_i32, %c0_i32_0 : i32, i32
  }
  func.func @transform_5(%arg0: i32) -> (i32, i32) {
    %c0_i32 = arith.constant 0 : i32
    %c0_i32_0 = arith.constant 0 : i32
    %c0_i32_1 = arith.constant 0 : i32
    return %c0_i32, %c0_i32_0 : i32, i32
  }
  func.func @transform_6(%arg0: i32) -> (i32, i32) {
    %c0_i32 = arith.constant 0 : i32
    %c0_i32_0 = arith.constant 0 : i32
    %c0_i32_1 = arith.constant 0 : i32
    return %c0_i32, %c0_i32_0 : i32, i32
  }
  func.func @transform_7(%arg0: i32) -> (i32, i32) {
    %c0_i32 = arith.constant 0 : i32
    %c0_i32_0 = arith.constant 0 : i32
    return %arg0, %c0_i32 : i32, i32
  }
}

</mosaic_0001>

<llo_original>
// kernel: tpu_custom_call.1
$region0: #{tpu_custom_call.1}
  #allocation0 [shape = 'u32[]', space=smem, size = 0x4, offset = 0x4, fixed_abs, tag = 'smem constant byte address 0x4 - core index']
  #allocation1 [shape = 'u32[144,128]{1,0:T(1,128)}', space=vmem, size = 0x12000, scoped, tag = 'internal scratch']
  %s0 = inlined_call_operand.hbm [shape: f32[8,64], index: 0, kind: input, shape index: {}]
  %s1 = inlined_call_operand.hbm [shape: bf16[64,256], index: 1, kind: input, shape index: {}]
  %s2 = inlined_call_operand.vmem [shape: f32[1,256], index: 2, kind: input, shape index: {}]
  %s3 = inlined_call_operand.hbm [shape: bf16[256,256], index: 3, kind: input, shape index: {}]
  %s4 = inlined_call_operand.vmem [shape: f32[1,256], index: 4, kind: input, shape index: {}]
  %s5 = inlined_call_operand.hbm [shape: bf16[256,128], index: 5, kind: input, shape index: {}]
  %s6 = inlined_call_operand.vmem [shape: f32[1,128], index: 6, kind: input, shape index: {}]
  %s7 = inlined_call_operand.hbm [shape: f32[8,128], index: 7, kind: output, shape index: {}]
  %s8 = sld [smem:[#allocation0]]
  $region54: #{tpu_custom_call.1} parent=0
    _
  %s10 = ssub.s32 1, %s8
  %s11 = scalar_select 0, %s10, %s8
  $region1: #{tpu_custom_call.1} parent=0
    #allocation2 [shape = 'u8[4096]{0}', space=vmem, size = 0x1000, scoped, tag = 'input window, operand 0, single buffered']
    #allocation3 [shape = 's32[1]{0}', space=sflag, size = 0x4, scoped, tag = 'scoped memory for tpu_custom_call.1']
    #allocation4 [shape = 's32[1]{0}', space=sflag, size = 0x4, scoped, tag = 'scoped memory for tpu_custom_call.1']
    #allocation5 [shape = 'u8[32768]{0}', space=vmem, size = 0x8000, scoped, tag = 'input window, operand 1, single buffered']
    #allocation6 [shape = 's32[1]{0}', space=sflag, size = 0x4, scoped, tag = 'scoped memory for tpu_custom_call.1']
    #allocation7 [shape = 'u8[131072]{0}', space=vmem, size = 0x20000, scoped, tag = 'input window, operand 3, single buffered']
    #allocation8 [shape = 'u8[65536]{0}', space=vmem, size = 0x10000, scoped, tag = 'input window, operand 5, single buffered']
    #allocation9 [shape = 's32[1]{0}', space=sflag, size = 0x4, scoped, tag = 'scoped memory for tpu_custom_call.1']
    #allocation10 [shape = 'u8[4096]{0}', space=vmem, size = 0x1000, scoped, tag = 'output window, operand 0, single buffered']
    %12 = vsyncpa [#allocation3], 0
    %13 = vsyncpa [#allocation6], 0
    %14 = vsyncpa [#allocation9], 0
    %15 = vsyncpa [#allocation4], 0
    // Predicated region
    $region2: #{tpu_custom_call.1} parent=1 // pred_check
      _
    $region3: #{tpu_custom_call.1} parent=1 // pred_check_branch
      %17 = sbr.rel (0) target = $region5
    $region4: #{tpu_custom_call.1} parent=1 // pred_region
      %s19 = ssub.s32 128, 128
      %20 = vsyncadd [#allocation3], %s19
      %s22 = sshll.u32 [#allocation2], 4
      %s23 = int_to_ptr.vmem [resolvable:$true] %s22
      %25 = dma.hbm_to_vmem [thread:$0]  %s0, 128, %s23, [#allocation3]
    $region5: #{tpu_custom_call.1} parent=1 // pred_fallthru
      _
    // Predicated region
    $region6: #{tpu_custom_call.1} parent=1 // pred_check
      _
    $region7: #{tpu_custom_call.1} parent=1 // pred_check_branch
      %27 = sbr.rel (0) target = $region9
    $region8: #{tpu_custom_call.1} parent=1 // pred_region
      %s29 = ssub.s32 1024, 1024
      %30 = vsyncadd [#allocation6], %s29
      %s31 = sshll.u32 [#allocation5], 4
      %s32 = int_to_ptr.vmem [resolvable:$true] %s31
      %37 = dma.hbm_to_vmem [thread:$0]  %s1, 1024, %s32, [#allocation6], 128, 128, 8
    $region9: #{tpu_custom_call.1} parent=1 // pred_fallthru
      _
    // Predicated region
    $region10: #{tpu_custom_call.1} parent=1 // pred_check
      _
    $region11: #{tpu_custom_call.1} parent=1 // pred_check_branch
      %39 = sbr.rel (0) target = $region13
    $region12: #{tpu_custom_call.1} parent=1 // pred_region
      _
    $region13: #{tpu_custom_call.1} parent=1 // pred_fallthru
      _
    // Predicated region
    $region14: #{tpu_custom_call.1} parent=1 // pred_check
      _
    $region15: #{tpu_custom_call.1} parent=1 // pred_check_branch
      %41 = sbr.rel (0) target = $region17
    $region16: #{tpu_custom_call.1} parent=1 // pred_region
      %s43 = ssub.s32 4096, 4096
      %44 = vsyncadd [#allocation6], %s43
      %s45 = sshll.u32 [#allocation7], 4
      %s46 = int_to_ptr.vmem [resolvable:$true] %s45
      %51 = dma.hbm_to_vmem [thread:$0]  %s3, 4096, %s46, [#allocation6], 128, 128, 8
    $region17: #{tpu_custom_call.1} parent=1 // pred_fallthru
      _
    // Predicated region
    $region18: #{tpu_custom_call.1} parent=1 // pred_check
      _
    $region19: #{tpu_custom_call.1} parent=1 // pred_check_branch
      %53 = sbr.rel (0) target = $region21
    $region20: #{tpu_custom_call.1} parent=1 // pred_region
      _
    $region21: #{tpu_custom_call.1} parent=1 // pred_fallthru
      _
    // Predicated region
    $region22: #{tpu_custom_call.1} parent=1 // pred_check
      _
    $region23: #{tpu_custom_call.1} parent=1 // pred_check_branch
      %55 = sbr.rel (0) target = $region25
    $region24: #{tpu_custom_call.1} parent=1 // pred_region
      %s57 = ssub.s32 2048, 2048
      %58 = vsyncadd [#allocation9], %s57
      %s59 = sshll.u32 [#allocation8], 4
      %s60 = int_to_ptr.vmem [resolvable:$true] %s59
      %65 = dma.hbm_to_vmem [thread:$0]  %s5, 2048, %s60, [#allocation9], 64, 64, 4
    $region25: #{tpu_custom_call.1} parent=1 // pred_fallthru
      _
    // Predicated region
    $region26: #{tpu_custom_call.1} parent=1 // pred_check
      _
    $region27: #{tpu_custom_call.1} parent=1 // pred_check_branch
      %67 = sbr.rel (0) target = $region29
    $region28: #{tpu_custom_call.1} parent=1 // pred_region
      _
    $region29: #{tpu_custom_call.1} parent=1 // pred_fallthru
      _
    // Predicated region
    $region30: #{tpu_custom_call.1} parent=1 // pred_check
      _
    $region31: #{tpu_custom_call.1} parent=1 // pred_check_branch
      %69 = sbr.rel (0) target = $region33
    $region32: #{tpu_custom_call.1} parent=1 // pred_region
      %70 = dma.done [#allocation3], 128
    $region33: #{tpu_custom_call.1} parent=1 // pred_fallthru
      _
    // Predicated region
    $region34: #{tpu_custom_call.1} parent=1 // pred_check
      _
    $region35: #{tpu_custom_call.1} parent=1 // pred_check_branch
      %72 = sbr.rel (0) target = $region37
    $region36: #{tpu_custom_call.1} parent=1 // pred_region
      %73 = dma.done [#allocation6], 1024
    $region37: #{tpu_custom_call.1} parent=1 // pred_fallthru
      _
    // Predicated region
    $region38: #{tpu_custom_call.1} parent=1 // pred_check
      _
    $region39: #{tpu_custom_call.1} parent=1 // pred_check_branch
      %75 = sbr.rel (0) target = $region41
    $region40: #{tpu_custom_call.1} parent=1 // pred_region
      %76 = dma.done [#allocation6], 4096
    $region41: #{tpu_custom_call.1} parent=1 // pred_fallthru
      _
    // Predicated region
    $region42: #{tpu_custom_call.1} parent=1 // pred_check
      _
    $region43: #{tpu_custom_call.1} parent=1 // pred_check_branch
      %78 = sbr.rel (0) target = $region45
    $region44: #{tpu_custom_call.1} parent=1 // pred_region
      %79 = dma.done [#allocation9], 2048
    $region45: #{tpu_custom_call.1} parent=1 // pred_fallthru
      _
    %v81 = vld [vmem:[#allocation2] sm:$0xff]
    %v82 = vpack.c.bf16 %v81, %v81
    %v83 = vld [vmem:[#allocation5] sm:$0xff]
    %v84 = vld [vmem:[#allocation5 + $0x8] sm:$0xff]
    %v85 = vld [vmem:[#allocation5 + $0x10] sm:$0xff]
    %v86 = vld [vmem:[#allocation5 + $0x18] sm:$0xff]
    %v87 = vld [vmem:[#allocation5 + $0x20] sm:$0xff]
    %v88 = vld [vmem:[#allocation5 + $0x28] sm:$0xff]
    %v89 = vld [vmem:[#allocation5 + $0x30] sm:$0xff]
    %v90 = vld [vmem:[#allocation5 + $0x38] sm:$0xff]
    %v91 = vld [vmem:[%s2] sm:$0x3]
    %v93 = vlaneseq
    %v94 = vshrl.u32 %v93, 7
    %v95 = vsub.s32 0, %v94
    %v96 = vrot.slane %v91, %v95
    %v97 = vlaneseq
    %v98 = vshrl.u32 %v97, 7
    %v99 = vsub.s32 1, %v98
    %v100 = vrot.slane %v91, %v99
    %v111 = vunpack.c.l.b16 %v83
    %v112 = vunpack.c.h.b16 %v83
    %v113 = vunpack.c.l.b16 %v84
    %v114 = vunpack.c.h.b16 %v84
    %v115 = vunpack.c.l.b16 %v85
    %v116 = vunpack.c.h.b16 %v85
    %v117 = vunpack.c.l.b16 %v86
    %v118 = vunpack.c.h.b16 %v86
    %v119 = vunpack.c.l.b16 %v87
    %v120 = vunpack.c.h.b16 %v87
    %v121 = vunpack.c.l.b16 %v88
    %v122 = vunpack.c.h.b16 %v88
    %v123 = vunpack.c.l.b16 %v89
    %v124 = vunpack.c.h.b16 %v89
    %v125 = vunpack.c.l.b16 %v90
    %v126 = vunpack.c.h.b16 %v90
    %v127 = vpack.c.b16 %v113, %v111
    %v128 = vpack.c.b16 %v114, %v112
    %v129 = vpack.c.b16 %v117, %v115
    %v130 = vpack.c.b16 %v118, %v116
    %v131 = vpack.c.b16 %v121, %v119
    %v132 = vpack.c.b16 %v122, %v120
    %v133 = vpack.c.b16 %v125, %v123
    %v134 = vpack.c.b16 %v126, %v124
    %vm143 = vcmask 523264
    %v145 = vsel %vm143, %v82, 0
    %147 = vmatprep.subr.bf16.mxu0 %v128
    %148 = vmatpush1.bf16.msra.mxu0 %v127
    %149 = vmatprep.subr.bf16.mxu0 %v130
    %150 = vmatpush1.bf16.msra.mxu0 %v129
    %151 = vmatprep.subr.bf16.mxu0 %v132
    %152 = vmatpush1.bf16.msra.mxu0 %v131
    %153 = vmatprep.subr.bf16.mxu0 %v134
    %154 = vmatpush1.bf16.msra.mxu0 %v133
    %155 = vmatprep.subr.bf16.mxu0 0
    %156 = vmatpush1.bf16.msra.mxu0 0
    %157 = vmatprep.subr.bf16.mxu0 0
    %158 = vmatpush1.bf16.msra.mxu0 0
    %159 = vmatprep.subr.bf16.mxu0 0
    %160 = vmatpush1.bf16.msra.mxu0 0
    %161 = vmatprep.subr.bf16.mxu0 0
    %162 = vmatpush1.bf16.msra.mxu0 0
    %163 = vmatprep.subr.bf16.mxu0 0
    %164 = vmatpush1.bf16.msra.mxu0 0
    %165 = vmatprep.subr.bf16.mxu0 0
    %166 = vmatpush1.bf16.msra.mxu0 0
    %167 = vmatprep.subr.bf16.mxu0 0
    %168 = vmatpush1.bf16.msra.mxu0 0
    %169 = vmatprep.subr.bf16.mxu0 0
    %170 = vmatpush1.bf16.msra.mxu0 0
    %171 = vmatprep.subr.bf16.mxu0 0
    %172 = vmatpush1.bf16.msra.mxu0 0
    %173 = vmatprep.subr.bf16.mxu0 0
    %174 = vmatpush1.bf16.msra.mxu0 0
    %175 = vmatprep.subr.bf16.mxu0 0
    %176 = vmatpush1.bf16.msra.mxu0 0
    %177 = vmatprep.subr.bf16.mxu0 0
    %178 = vmatpush1.bf16.msra.mxu0 0
    %179 = vmatprep.mubr.bf16.mxu0 0
    %180 = vmatmul.mubr.bf16.gmra.mrb[0].mxu0 %v145
    %v181 = vpop.f32.mrb[0].mxu0
    %v182 = vadd.f32 %v96, %v181
    %v183 = vpop.f32.mrb[0].mxu0
    %v184 = vadd.f32 %v100, %v183
    %v185 = vpop.f32.mrb[0].mxu0
    %v186 = vpop.f32.mrb[0].mxu0
    %187 = vdwg.mxu0
    %v188 = vmax.f32 %v182, 0.0
    %v189 = vmax.f32 %v184, 0.0
    %v190 = vpack.c.bf16 %v188, %v188
    %v191 = vpack.c.bf16 %v189, %v189
    %v192 = vld [vmem:[#allocation7] sm:$0xff]
    %v193 = vld [vmem:[#allocation7 + $0x8] sm:$0xff]
    %v194 = vld [vmem:[#allocation7 + $0x10] sm:$0xff]
    %v195 = vld [vmem:[#allocation7 + $0x18] sm:$0xff]
    %v196 = vld [vmem:[#allocation7 + $0x20] sm:$0xff]
    %v197 = vld [vmem:[#allocation7 + $0x28] sm:$0xff]
    %v198 = vld [vmem:[#allocation7 + $0x30] sm:$0xff]
    %v199 = vld [vmem:[#allocation7 + $0x38] sm:$0xff]
    %v200 = vld [vmem:[#allocation7 + $0x40] sm:$0xff]
    %v201 = vld [vmem:[#allocation7 + $0x48] sm:$0xff]
    %v202 = vld [vmem:[#allocation7 + $0x50] sm:$0xff]
    %v203 = vld [vmem:[#allocation7 + $0x58] sm:$0xff]
    %v204 = vld [vmem:[#allocation7 + $0x60] sm:$0xff]
    %v205 = vld [vmem:[#allocation7 + $0x68] sm:$0xff]
    %v206 = vld [vmem:[#allocation7 + $0x70] sm:$0xff]
    %v207 = vld [vmem:[#allocation7 + $0x78] sm:$0xff]
    %v208 = vld [vmem:[#allocation7 + $0x80] sm:$0xff]
    %v209 = vld [vmem:[#allocation7 + $0x88] sm:$0xff]
    %v210 = vld [vmem:[#allocation7 + $0x90] sm:$0xff]
    %v211 = vld [vmem:[#allocation7 + $0x98] sm:$0xff]
    %v212 = vld [vmem:[#allocation7 + $0xa0] sm:$0xff]
    %v213 = vld [vmem:[#allocation7 + $0xa8] sm:$0xff]
    %v214 = vld [vmem:[#allocation7 + $0xb0] sm:$0xff]
    %v215 = vld [vmem:[#allocation7 + $0xb8] sm:$0xff]
    %v216 = vld [vmem:[#allocation7 + $0xc0] sm:$0xff]
    %v217 = vld [vmem:[#allocation7 + $0xc8] sm:$0xff]
    %v218 = vld [vmem:[#allocation7 + $0xd0] sm:$0xff]
    %v219 = vld [vmem:[#allocation7 + $0xd8] sm:$0xff]
    %v220 = vld [vmem:[#allocation7 + $0xe0] sm:$0xff]
    %v221 = vld [vmem:[#allocation7 + $0xe8] sm:$0xff]
    %v222 = vld [vmem:[#allocation7 + $0xf0] sm:$0xff]
    %v223 = vld [vmem:[#allocation7 + $0xf8] sm:$0xff]
    %v224 = vld [vmem:[%s4] sm:$0x3]
    %v226 = vlaneseq
    %v227 = vshrl.u32 %v226, 7
    %v228 = vsub.s32 0, %v227
    %v229 = vrot.slane %v224, %v228
    %v230 = vlaneseq
    %v231 = vshrl.u32 %v230, 7
    %v232 = vsub.s32 1, %v231
    %v233 = vrot.slane %v224, %v232
    %v268 = vunpack.c.l.b16 %v192
    %v269 = vunpack.c.h.b16 %v192
    %v270 = vunpack.c.l.b16 %v193
    %v271 = vunpack.c.h.b16 %v193
    %v272 = vunpack.c.l.b16 %v194
    %v273 = vunpack.c.h.b16 %v194
    %v274 = vunpack.c.l.b16 %v195
    %v275 = vunpack.c.h.b16 %v195
    %v276 = vunpack.c.l.b16 %v196
    %v277 = vunpack.c.h.b16 %v196
    %v278 = vunpack.c.l.b16 %v197
    %v279 = vunpack.c.h.b16 %v197
    %v280 = vunpack.c.l.b16 %v198
    %v281 = vunpack.c.h.b16 %v198
    %v282 = vunpack.c.l.b16 %v199
    %v283 = vunpack.c.h.b16 %v199
    %v284 = vunpack.c.l.b16 %v200
    %v285 = vunpack.c.h.b16 %v200
    %v286 = vunpack.c.l.b16 %v201
    %v287 = vunpack.c.h.b16 %v201
    %v288 = vunpack.c.l.b16 %v202
    %v289 = vunpack.c.h.b16 %v202
    %v290 = vunpack.c.l.b16 %v203
    %v291 = vunpack.c.h.b16 %v203
    %v292 = vunpack.c.l.b16 %v204
    %v293 = vunpack.c.h.b16 %v204
    %v294 = vunpack.c.l.b16 %v205
    %v295 = vunpack.c.h.b16 %v205
    %v296 = vunpack.c.l.b16 %v206
    %v297 = vunpack.c.h.b16 %v206
    %v298 = vunpack.c.l.b16 %v207
    %v299 = vunpack.c.h.b16 %v207
    %v300 = vunpack.c.l.b16 %v208
    %v301 = vunpack.c.h.b16 %v208
    %v302 = vunpack.c.l.b16 %v209
    %v303 = vunpack.c.h.b16 %v209
    %v304 = vunpack.c.l.b16 %v210
    %v305 = vunpack.c.h.b16 %v210
    %v306 = vunpack.c.l.b16 %v211
    %v307 = vunpack.c.h.b16 %v211
    %v308 = vunpack.c.l.b16 %v212
    %v309 = vunpack.c.h.b16 %v212
    %v310 = vunpack.c.l.b16 %v213
    %v311 = vunpack.c.h.b16 %v213
    %v312 = vunpack.c.l.b16 %v214
    %v313 = vunpack.c.h.b16 %v214
    %v314 = vunpack.c.l.b16 %v215
    %v315 = vunpack.c.h.b16 %v215
    %v316 = vunpack.c.l.b16 %v216
    %v317 = vunpack.c.h.b16 %v216
    %v318 = vunpack.c.l.b16 %v217
    %v319 = vunpack.c.h.b16 %v217
    %v320 = vunpack.c.l.b16 %v218
    %v321 = vunpack.c.h.b16 %v218
    %v322 = vunpack.c.l.b16 %v219
    %v323 = vunpack.c.h.b16 %v219
    %v324 = vunpack.c.l.b16 %v220
    %v325 = vunpack.c.h.b16 %v220
    %v326 = vunpack.c.l.b16 %v221
    %v327 = vunpack.c.h.b16 %v221
    %v328 = vunpack.c.l.b16 %v222
    %v329 = vunpack.c.h.b16 %v222
    %v330 = vunpack.c.l.b16 %v223
    %v331 = vunpack.c.h.b16 %v223
    %v332 = vpack.c.b16 %v270, %v268
    %v333 = vpack.c.b16 %v271, %v269
    %v334 = vpack.c.b16 %v274, %v272
    %v335 = vpack.c.b16 %v275, %v273
    %v336 = vpack.c.b16 %v278, %v276
    %v337 = vpack.c.b16 %v279, %v277
    %v338 = vpack.c.b16 %v282, %v280
    %v339 = vpack.c.b16 %v283, %v281
    %v340 = vpack.c.b16 %v286, %v284
    %v341 = vpack.c.b16 %v287, %v285
    %v342 = vpack.c.b16 %v290, %v288
    %v343 = vpack.c.b16 %v291, %v289
    %v344 = vpack.c.b16 %v294, %v292
    %v345 = vpack.c.b16 %v295, %v293
    %v346 = vpack.c.b16 %v298, %v296
    %v347 = vpack.c.b16 %v299, %v297
    %v348 = vpack.c.b16 %v302, %v300
    %v349 = vpack.c.b16 %v303, %v301
    %v350 = vpack.c.b16 %v306, %v304
    %v351 = vpack.c.b16 %v307, %v305
    %v352 = vpack.c.b16 %v310, %v308
    %v353 = vpack.c.b16 %v311, %v309
    %v354 = vpack.c.b16 %v314, %v312
    %v355 = vpack.c.b16 %v315, %v313
    %v356 = vpack.c.b16 %v318, %v316
    %v357 = vpack.c.b16 %v319, %v317
    %v358 = vpack.c.b16 %v322, %v320
    %v359 = vpack.c.b16 %v323, %v321
    %v360 = vpack.c.b16 %v326, %v324
    %v361 = vpack.c.b16 %v327, %v325
    %v362 = vpack.c.b16 %v330, %v328
    %v363 = vpack.c.b16 %v331, %v329
    %396 = vmatprep.subr.bf16.mxu0 %v333
    %397 = vmatpush1.bf16.msra.mxu0 %v332
    %398 = vmatprep.subr.bf16.mxu0 %v335
    %399 = vmatpush1.bf16.msra.mxu0 %v334
    %400 = vmatprep.subr.bf16.mxu0 %v337
    %401 = vmatpush1.bf16.msra.mxu0 %v336
    %402 = vmatprep.subr.bf16.mxu0 %v339
    %403 = vmatpush1.bf16.msra.mxu0 %v338
    %404 = vmatprep.subr.bf16.mxu0 %v341
    %405 = vmatpush1.bf16.msra.mxu0 %v340
    %406 = vmatprep.subr.bf16.mxu0 %v343
    %407 = vmatpush1.bf16.msra.mxu0 %v342
    %408 = vmatprep.subr.bf16.mxu0 %v345
    %409 = vmatpush1.bf16.msra.mxu0 %v344
    %410 = vmatprep.subr.bf16.mxu0 %v347
    %411 = vmatpush1.bf16.msra.mxu0 %v346
    %412 = vmatprep.subr.bf16.mxu0 %v349
    %413 = vmatpush1.bf16.msra.mxu0 %v348
    %414 = vmatprep.subr.bf16.mxu0 %v351
    %415 = vmatpush1.bf16.msra.mxu0 %v350
    %416 = vmatprep.subr.bf16.mxu0 %v353
    %417 = vmatpush1.bf16.msra.mxu0 %v352
    %418 = vmatprep.subr.bf16.mxu0 %v355
    %419 = vmatpush1.bf16.msra.mxu0 %v354
    %420 = vmatprep.subr.bf16.mxu0 %v357
    %421 = vmatpush1.bf16.msra.mxu0 %v356
    %422 = vmatprep.subr.bf16.mxu0 %v359
    %423 = vmatpush1.bf16.msra.mxu0 %v358
    %424 = vmatprep.subr.bf16.mxu0 %v361
    %425 = vmatpush1.bf16.msra.mxu0 %v360
    %426 = vmatprep.subr.bf16.mxu0 %v363
    %427 = vmatpush1.bf16.msra.mxu0 %v362
    %428 = vmatprep.mubr.bf16.mxu0 %v191
    %429 = vmatmul.mubr.bf16.gmra.mrb[0].mxu0 %v190
    %v430 = vpop.f32.mrb[0].mxu0
    %v431 = vadd.f32 %v229, %v430
    %v432 = vpop.f32.mrb[0].mxu0
    %v433 = vadd.f32 %v233, %v432
    %v434 = vpop.f32.mrb[0].mxu0
    %v435 = vpop.f32.mrb[0].mxu0
    %436 = vdwg.mxu0
    %v437 = vmax.f32 %v431, 0.0
    %v438 = vmax.f32 %v433, 0.0
    %v439 = vpack.c.bf16 %v437, %v437
    %v440 = vpack.c.bf16 %v438, %v438
    %v441 = vld [vmem:[#allocation8] sm:$0xf]
    %v442 = vld [vmem:[#allocation8 + $0x4] sm:$0xf]
    %v443 = vld [vmem:[#allocation8 + $0x8] sm:$0xf]
    %v444 = vld [vmem:[#allocation8 + $0xc] sm:$0xf]
    %v445 = vld [vmem:[#allocation8 + $0x10] sm:$0xf]
    %v446 = vld [vmem:[#allocation8 + $0x14] sm:$0xf]
    %v447 = vld [vmem:[#allocation8 + $0x18] sm:$0xf]
    %v448 = vld [vmem:[#allocation8 + $0x1c] sm:$0xf]
    %v449 = vld [vmem:[#allocation8 + $0x20] sm:$0xf]
    %v450 = vld [vmem:[#allocation8 + $0x24] sm:$0xf]
    %v451 = vld [vmem:[#allocation8 + $0x28] sm:$0xf]
    %v452 = vld [vmem:[#allocation8 + $0x2c] sm:$0xf]
    %v453 = vld [vmem:[#allocation8 + $0x30] sm:$0xf]
    %v454 = vld [vmem:[#allocation8 + $0x34] sm:$0xf]
    %v455 = vld [vmem:[#allocation8 + $0x38] sm:$0xf]
    %v456 = vld [vmem:[#allocation8 + $0x3c] sm:$0xf]
    %v457 = vld [vmem:[#allocation8 + $0x40] sm:$0xf]
    %v458 = vld [vmem:[#allocation8 + $0x44] sm:$0xf]
    %v459 = vld [vmem:[#allocation8 + $0x48] sm:$0xf]
    %v460 = vld [vmem:[#allocation8 + $0x4c] sm:$0xf]
    %v461 = vld [vmem:[#allocation8 + $0x50] sm:$0xf]
    %v462 = vld [vmem:[#allocation8 + $0x54] sm:$0xf]
    %v463 = vld [vmem:[#allocation8 + $0x58] sm:$0xf]
    %v464 = vld [vmem:[#allocation8 + $0x5c] sm:$0xf]
    %v465 = vld [vmem:[#allocation8 + $0x60] sm:$0xf]
    %v466 = vld [vmem:[#allocation8 + $0x64] sm:$0xf]
    %v467 = vld [vmem:[#allocation8 + $0x68] sm:$0xf]
    %v468 = vld [vmem:[#allocation8 + $0x6c] sm:$0xf]
    %v469 = vld [vmem:[#allocation8 + $0x70] sm:$0xf]
    %v470 = vld [vmem:[#allocation8 + $0x74] sm:$0xf]
    %v471 = vld [vmem:[#allocation8 + $0x78] sm:$0xf]
    %v472 = vld [vmem:[#allocation8 + $0x7c] sm:$0xf]
    %v473 = vld [vmem:[%s6] sm:$0x1]
    %v475 = vlaneseq
    %v476 = vshrl.u32 %v475, 7
    %v477 = vsub.s32 0, %v476
    %v478 = vrot.slane %v473, %v477
    %v512 = vunpack.c.l.b16 %v441
    %v513 = vunpack.c.l.b16 %v442
    %v514 = vunpack.c.l.b16 %v443
    %v515 = vunpack.c.l.b16 %v444
    %v516 = vunpack.c.l.b16 %v445
    %v517 = vunpack.c.l.b16 %v446
    %v518 = vunpack.c.l.b16 %v447
    %v519 = vunpack.c.l.b16 %v448
    %v520 = vunpack.c.l.b16 %v449
    %v521 = vunpack.c.l.b16 %v450
    %v522 = vunpack.c.l.b16 %v451
    %v523 = vunpack.c.l.b16 %v452
    %v524 = vunpack.c.l.b16 %v453
    %v525 = vunpack.c.l.b16 %v454
    %v526 = vunpack.c.l.b16 %v455
    %v527 = vunpack.c.l.b16 %v456
    %v528 = vunpack.c.l.b16 %v457
    %v529 = vunpack.c.l.b16 %v458
    %v530 = vunpack.c.l.b16 %v459
    %v531 = vunpack.c.l.b16 %v460
    %v532 = vunpack.c.l.b16 %v461
    %v533 = vunpack.c.l.b16 %v462
    %v534 = vunpack.c.l.b16 %v463
    %v535 = vunpack.c.l.b16 %v464
    %v536 = vunpack.c.l.b16 %v465
    %v537 = vunpack.c.l.b16 %v466
    %v538 = vunpack.c.l.b16 %v467
    %v539 = vunpack.c.l.b16 %v468
    %v540 = vunpack.c.l.b16 %v469
    %v541 = vunpack.c.l.b16 %v470
    %v542 = vunpack.c.l.b16 %v471
    %v543 = vunpack.c.l.b16 %v472
    %v544 = vpack.c.b16 %v513, %v512
    %v545 = vpack.c.b16 %v515, %v514
    %v546 = vpack.c.b16 %v517, %v516
    %v547 = vpack.c.b16 %v519, %v518
    %v548 = vpack.c.b16 %v521, %v520
    %v549 = vpack.c.b16 %v523, %v522
    %v550 = vpack.c.b16 %v525, %v524
    %v551 = vpack.c.b16 %v527, %v526
    %v552 = vpack.c.b16 %v529, %v528
    %v553 = vpack.c.b16 %v531, %v530
    %v554 = vpack.c.b16 %v533, %v532
    %v555 = vpack.c.b16 %v535, %v534
    %v556 = vpack.c.b16 %v537, %v536
    %v557 = vpack.c.b16 %v539, %v538
    %v558 = vpack.c.b16 %v541, %v540
    %v559 = vpack.c.b16 %v543, %v542
    %576 = vmatprep.subr.bf16.mxu0 0
    %577 = vmatpush1.bf16.msra.mxu0 %v544
    %578 = vmatprep.subr.bf16.mxu0 0
    %579 = vmatpush1.bf16.msra.mxu0 %v545
    %580 = vmatprep.subr.bf16.mxu0 0
    %581 = vmatpush1.bf16.msra.mxu0 %v546
    %582 = vmatprep.subr.bf16.mxu0 0
    %583 = vmatpush1.bf16.msra.mxu0 %v547
    %584 = vmatprep.subr.bf16.mxu0 0
    %585 = vmatpush1.bf16.msra.mxu0 %v548
    %586 = vmatprep.subr.bf16.mxu0 0
    %587 = vmatpush1.bf16.msra.mxu0 %v549
    %588 = vmatprep.subr.bf16.mxu0 0
    %589 = vmatpush1.bf16.msra.mxu0 %v550
    %590 = vmatprep.subr.bf16.mxu0 0
    %591 = vmatpush1.bf16.msra.mxu0 %v551
    %592 = vmatprep.subr.bf16.mxu0 0
    %593 = vmatpush1.bf16.msra.mxu0 %v552
    %594 = vmatprep.subr.bf16.mxu0 0
    %595 = vmatpush1.bf16.msra.mxu0 %v553
    %596 = vmatprep.subr.bf16.mxu0 0
    %597 = vmatpush1.bf16.msra.mxu0 %v554
    %598 = vmatprep.subr.bf16.mxu0 0
    %599 = vmatpush1.bf16.msra.mxu0 %v555
    %600 = vmatprep.subr.bf16.mxu0 0
    %601 = vmatpush1.bf16.msra.mxu0 %v556
    %602 = vmatprep.subr.bf16.mxu0 0
    %603 = vmatpush1.bf16.msra.mxu0 %v557
    %604 = vmatprep.subr.bf16.mxu0 0
    %605 = vmatpush1.bf16.msra.mxu0 %v558
    %606 = vmatprep.subr.bf16.mxu0 0
    %607 = vmatpush1.bf16.msra.mxu0 %v559
    %608 = vmatprep.mubr.bf16.mxu0 %v440
    %609 = vmatmul.mubr.bf16.gmra.mrb[0].mxu0 %v439
    %v610 = vpop.f32.mrb[0].mxu0
    %v611 = vadd.f32 %v478, %v610
    %v612 = vpop.f32.mrb[0].mxu0
    %v613 = vpop.f32.mrb[0].mxu0
    %v614 = vpop.f32.mrb[0].mxu0
    %615 = vdwg.mxu0
    %616 = vst [vmem:[#allocation10] sm:$0xff] %v611
    // Predicated region
    $region46: #{tpu_custom_call.1} parent=1 // pred_check
      _
    $region47: #{tpu_custom_call.1} parent=1 // pred_check_branch
      %618 = sbr.rel (0) target = $region49
    $region48: #{tpu_custom_call.1} parent=1 // pred_region
      %s620 = ssub.s32 128, 128
      %621 = vsyncadd [#allocation4], %s620
      %s623 = sshll.u32 [#allocation10], 4
      %s624 = int_to_ptr.vmem [resolvable:$true] %s623
      %626 = dma.vmem_to_hbm [thread:$0]  %s624, 128, %s7, [#allocation4]
    $region49: #{tpu_custom_call.1} parent=1 // pred_fallthru
      _
    // Predicated region
    $region50: #{tpu_custom_call.1} parent=1 // pred_check
      _
    $region51: #{tpu_custom_call.1} parent=1 // pred_check_branch
      %628 = sbr.rel (0) target = $region53
    $region52: #{tpu_custom_call.1} parent=1 // pred_region
      %629 = dma.done [#allocation4], 128
    $region53: #{tpu_custom_call.1} parent=1 // pred_fallthru
      _
    %630 = vsyncpa [#allocation3], 1
    %631 = vsyncpa [#allocation6], 1
    %632 = vsyncpa [#allocation9], 1
    %633 = vsyncpa [#allocation4], 1

</llo_original>
